<compile_context>
chip_gen: v7x
topology: tpu7x:2x2x1
jax: 0.10.0
libtpu: 0.0.40
codegen_flags: <defaults>
</compile_context>

<pallas_src>
import functools
import math

import jax
import jax.numpy as jnp
from jax.experimental import pallas as pl
from jax.experimental.pallas import tpu as pltpu


def _round_up(x, m):
    return ((x + m - 1) // m) * m


# ----------------------------------------------------------------------------
# Fused Pallas kernel: whole MLP chain in one invocation.
#   refs = (x, w0, b0, ..., wL, bL, out, xpad_scratch)
#   x f32 (unpadded), w bf16 (padded), b f32 (padded), out f32 (unpadded).
# ----------------------------------------------------------------------------
def _mlp_fused_kernel(*refs, n_layers):
    x_ref = refs[0]                        # (M, K0)   f32, unpadded
    wb_refs = refs[1 : 1 + 2 * n_layers]   # (Kp, Np) bf16 / (1, Np) f32 pairs
    out_ref = refs[1 + 2 * n_layers]       # (M, out_dim) f32, unpadded
    xpad_ref = refs[2 + 2 * n_layers]      # (M, K0p) bf16 scratch

    k0 = x_ref.shape[1]
    k0p = xpad_ref.shape[1]

    # In-kernel pad + cast of the activation input (stays in VMEM).
    if k0 < k0p:
        xpad_ref[...] = jnp.zeros_like(xpad_ref)
    xpad_ref[:, :k0] = x_ref[...].astype(jnp.bfloat16)
    h = xpad_ref[...]                      # (M, K0p) bf16

    for i in range(n_layers):
        w = wb_refs[2 * i][...]            # (Kp_i, Np_i) bf16
        b = wb_refs[2 * i + 1][...]        # (1, Np_i)    f32
        y = jnp.dot(h, w, preferred_element_type=jnp.float32) + b
        if i < n_layers - 1:
            h = jnp.maximum(y, 0.0).astype(jnp.bfloat16)   # ReLU, next MXU pass
        else:
            # Final layer: no nonlinearity; write the unpadded result.
            out_ref[...] = y[:, : out_ref.shape[1]].astype(out_ref.dtype)


# ----------------------------------------------------------------------------
# Parameter construction (xavier_uniform weights, PyTorch-default bias init)
# plus one-time tile-aligned padding / bf16 cast.
# ----------------------------------------------------------------------------
def mlpgrow_dims(h_nodes, num_layers, multiplier, in_dim, out_dim):
    dims = [in_dim, h_nodes]
    cur = h_nodes
    for _ in range(num_layers):
        dims.append(cur * multiplier)
        cur *= multiplier
    dims.append(out_dim)
    return dims


def make_mlpgrow_params(key, h_nodes, num_layers, multiplier, in_dim, out_dim):
    """Returns [(w, b), ...] in f32, w stored as (in_features, out_features)."""
    dims = mlpgrow_dims(h_nodes, num_layers, multiplier, in_dim, out_dim)
    params = []
    for fan_in, fan_out in zip(dims[:-1], dims[1:]):
        key, kw, kb = jax.random.split(key, 3)
        bound = math.sqrt(6.0 / (fan_in + fan_out))      # xavier_uniform_
        w = jax.random.uniform(kw, (fan_in, fan_out), jnp.float32, -bound, bound)
        b_bound = 1.0 / math.sqrt(fan_in)                # nn.Linear default bias
        b = jax.random.uniform(kb, (fan_out,), jnp.float32, -b_bound, b_bound)
        params.append((w, b))
    return params


def pad_mlpgrow_params(params):
    """One-time padding to MXU/tile-friendly shapes; weights in bf16.

    Layer 0's contraction dim K is rounded only to the bf16 sublane tile (16);
    every other K / all N are rounded to 128 so consecutive layers' padded
    widths line up.  Zero padding keeps the math exact through ReLU.
    """
    padded = []
    for i, (w, b) in enumerate(params):
        K, N = w.shape
        Kp = _round_up(K, 16) if i == 0 else _round_up(K, 128)
        Np = _round_up(N, 128)
        wp = jnp.zeros((Kp, Np), jnp.bfloat16).at[:K, :N].set(w.astype(jnp.bfloat16))
        bp = jnp.zeros((1, Np), jnp.float32).at[0, :N].set(b)
        padded.append((wp, bp))
    return tuple(padded)


# ----------------------------------------------------------------------------
# Forward: single fused pallas_call; no wrapper-side pad/cast/slice ops.
# ----------------------------------------------------------------------------
@functools.partial(jax.jit, static_argnames=("out_dim",))
def mlpgrow_forward(padded_params, x, *, out_dim):
    M, _ = x.shape
    n_layers = len(padded_params)
    K0p = padded_params[0][0].shape[0]

    flat_inputs = [x]
    for wp, bp in padded_params:
        flat_inputs.append(wp)
        flat_inputs.append(bp)

    # Advisory cost estimate so XLA schedules this tiny custom call sensibly.
    flops = 0
    bytes_accessed = x.size * x.dtype.itemsize + M * out_dim * 4
    for wp, bp in padded_params:
        flops += 2 * M * wp.shape[0] * wp.shape[1]
        bytes_accessed += wp.size * wp.dtype.itemsize + bp.size * bp.dtype.itemsize

    # Everything is VMEM-resident: make sure scoped VMEM is big enough
    # (v5e default ~16 MiB) without exceeding v7x physical VMEM (64 MiB).
    max_np = max(wp.shape[1] for wp, _ in padded_params)
    resident = bytes_accessed + M * K0p * 2 + 4 * M * max_np * 4
    vmem_limit = int(min(64 * 2**20, max(16 * 2**20, 4 * resident)))

    vmem_spec = pl.BlockSpec(memory_space=pltpu.MemorySpace.VMEM)
    return pl.pallas_call(
        functools.partial(_mlp_fused_kernel, n_layers=n_layers),
        out_shape=jax.ShapeDtypeStruct((M, out_dim), jnp.float32),
        in_specs=[vmem_spec] * len(flat_inputs),
        out_specs=vmem_spec,
        scratch_shapes=[pltpu.VMEM((M, K0p), jnp.bfloat16)],
        compiler_params=pltpu.CompilerParams(vmem_limit_bytes=vmem_limit),
        cost_estimate=pl.CostEstimate(
            flops=int(flops), transcendentals=0, bytes_accessed=int(bytes_accessed)
        ),
    )(*flat_inputs)


# ----------------------------------------------------------------------------
# References for correctness checks (use UNPADDED params).
# ----------------------------------------------------------------------------
def mlpgrow_ref_bf16(params, x):
    """Mirrors the kernel's numerics: bf16 operands, f32 accumulation."""
    h = x.astype(jnp.bfloat16)
    n = len(params)
    for i, (w, b) in enumerate(params):
        y = jnp.dot(h, w.astype(jnp.bfloat16), preferred_element_type=jnp.float32) + b
        if i < n - 1:
            h = jnp.maximum(y, 0.0).astype(jnp.bfloat16)
        else:
            h = y
    return h


def mlpgrow_ref_f32(params, x):
    n = len(params)
    for i, (w, b) in enumerate(params):
        x = x @ w + b
        if i < n - 1:
            x = jnp.maximum(x, 0.0)
    return x


if __name__ == "__main__":
    key = jax.random.PRNGKey(0)
    k_params, k_x = jax.random.split(key)

    # Small, MLPGrow-consistent configuration: dims 8 -> 32 -> 64 -> 128 -> 4
    h_nodes, num_layers, multiplier = 32, 2, 2
    in_dim, out_dim = 8, 4
    batch = 16

    params = make_mlpgrow_params(
        k_params, h_nodes, num_layers, multiplier, in_dim, out_dim
    )
    padded_params = pad_mlpgrow_params(params)   # one-time padding / bf16 cast
    x = jax.random.normal(k_x, (batch, in_dim), jnp.float32)

    out = mlpgrow_forward(padded_params, x, out_dim=out_dim)
    out = jax.block_until_ready(out)
    assert out.shape == (batch, out_dim)

    # Tight-ish check against a reference mirroring the kernel's bf16/f32 path.
    ref_bf16 = mlpgrow_ref_bf16(params, x)
    assert jnp.allclose(out, ref_bf16, atol=1e-2, rtol=5e-2), float(
        jnp.max(jnp.abs(out - ref_bf16))
    )

    # Coarse sanity check against the pure-f32 reference (bf16 rounding only).
    ref_f32 = mlpgrow_ref_f32(params, x)
    assert jnp.allclose(out, ref_f32, atol=1e-1, rtol=1e-1), float(
        jnp.max(jnp.abs(out - ref_f32))
    )

    print("KERNEL_OK")
</pallas_src>

<mosaic_0001>
module attributes {stable_mosaic.version = 11 : i64} {
  func.func @_mlp_fused_kernel(%arg0: memref<16x8xf32, #tpu.memory_space<vmem>>, %arg1: memref<16x128xbf16, #tpu.memory_space<vmem>>, %arg2: memref<1x128xf32, #tpu.memory_space<vmem>>, %arg3: memref<128x128xbf16, #tpu.memory_space<vmem>>, %arg4: memref<1x128xf32, #tpu.memory_space<vmem>>, %arg5: memref<128x128xbf16, #tpu.memory_space<vmem>>, %arg6: memref<1x128xf32, #tpu.memory_space<vmem>>, %arg7: memref<128x128xbf16, #tpu.memory_space<vmem>>, %arg8: memref<1x128xf32, #tpu.memory_space<vmem>>, %arg9: memref<16x4xf32, #tpu.memory_space<vmem>>, %arg10: memref<16x16xbf16, #tpu.memory_space<vmem>>) attributes {dimension_semantics = [], scalar_prefetch = 0 : i64, scratch_operands = 1 : i64, tpu.core_type = #tpu.core_type<tc>} {
    %cst = arith.constant 0.000000e+00 : bf16
    %0 = vector.broadcast %cst : bf16 to vector<16x16xbf16>
    %c0 = arith.constant 0 : index
    %c0_0 = arith.constant 0 : index
    %1 = vector.load %arg10[%c0, %c0_0] : memref<16x16xbf16, #tpu.memory_space<vmem>>, vector<16x16xbf16>
    tpu.vector_store %arg10[%c0, %c0_0], %0 {strides = array<i32>} : memref<16x16xbf16, #tpu.memory_space<vmem>>, vector<16x16xbf16>,
    %c0_1 = arith.constant 0 : index
    %c0_2 = arith.constant 0 : index
    %2 = vector.load %arg0[%c0_1, %c0_2] : memref<16x8xf32, #tpu.memory_space<vmem>>, vector<16x8xf32>
    %3 = arith.truncf %2 : vector<16x8xf32> to vector<16x8xbf16>
    %c0_3 = arith.constant 0 : index
    %c0_4 = arith.constant 0 : index
    %4 = vector.load %arg10[%c0_3, %c0_4] : memref<16x16xbf16, #tpu.memory_space<vmem>>, vector<16x8xbf16>
    tpu.vector_store %arg10[%c0_3, %c0_4], %3 {strides = array<i32>} : memref<16x16xbf16, #tpu.memory_space<vmem>>, vector<16x8xbf16>,
    %c0_5 = arith.constant 0 : index
    %c0_6 = arith.constant 0 : index
    %5 = vector.load %arg10[%c0_5, %c0_6] : memref<16x16xbf16, #tpu.memory_space<vmem>>, vector<16x16xbf16>
    %c0_7 = arith.constant 0 : index
    %c0_8 = arith.constant 0 : index
    %6 = vector.load %arg1[%c0_7, %c0_8] : memref<16x128xbf16, #tpu.memory_space<vmem>>, vector<16x128xbf16>
    %c0_9 = arith.constant 0 : index
    %c0_10 = arith.constant 0 : index
    %7 = vector.load %arg2[%c0_9, %c0_10] : memref<1x128xf32, #tpu.memory_space<vmem>>, vector<1x128xf32>
    %cst_11 = arith.constant dense<0.000000e+00> : vector<16x128xf32>
    %8 = tpu.matmul %5, %6, %cst_11 {dimension_numbers = #tpu.dot_dimension_numbers<[1], [0], [0], [1], [0, 0, 1, 1], [], []>} : vector<16x16xbf16>, vector<16x128xbf16>, vector<16x128xf32> -> vector<16x128xf32>
    %9 = vector.broadcast %7 : vector<1x128xf32> to vector<16x128xf32>
    %10 = arith.addf %8, %9 : vector<16x128xf32>
    %cst_12 = arith.constant 0.000000e+00 : f32
    %11 = vector.broadcast %cst_12 : f32 to vector<16x128xf32>
    %12 = arith.maximumf %10, %11 : vector<16x128xf32>
    %13 = arith.truncf %12 : vector<16x128xf32> to vector<16x128xbf16>
    %c0_13 = arith.constant 0 : index
    %c0_14 = arith.constant 0 : index
    %14 = vector.load %arg3[%c0_13, %c0_14] : memref<128x128xbf16, #tpu.memory_space<vmem>>, vector<128x128xbf16>
    %c0_15 = arith.constant 0 : index
    %c0_16 = arith.constant 0 : index
    %15 = vector.load %arg4[%c0_15, %c0_16] : memref<1x128xf32, #tpu.memory_space<vmem>>, vector<1x128xf32>
    %cst_17 = arith.constant dense<0.000000e+00> : vector<16x128xf32>
    %16 = tpu.matmul %13, %14, %cst_17 {dimension_numbers = #tpu.dot_dimension_numbers<[1], [0], [0], [1], [0, 0, 1, 1], [], []>} : vector<16x128xbf16>, vector<128x128xbf16>, vector<16x128xf32> -> vector<16x128xf32>
    %17 = vector.broadcast %15 : vector<1x128xf32> to vector<16x128xf32>
    %18 = arith.addf %16, %17 : vector<16x128xf32>
    %cst_18 = arith.constant 0.000000e+00 : f32
    %19 = vector.broadcast %cst_18 : f32 to vector<16x128xf32>
    %20 = arith.maximumf %18, %19 : vector<16x128xf32>
    %21 = arith.truncf %20 : vector<16x128xf32> to vector<16x128xbf16>
    %c0_19 = arith.constant 0 : index
    %c0_20 = arith.constant 0 : index
    %22 = vector.load %arg5[%c0_19, %c0_20] : memref<128x128xbf16, #tpu.memory_space<vmem>>, vector<128x128xbf16>
    %c0_21 = arith.constant 0 : index
    %c0_22 = arith.constant 0 : index
    %23 = vector.load %arg6[%c0_21, %c0_22] : memref<1x128xf32, #tpu.memory_space<vmem>>, vector<1x128xf32>
    %cst_23 = arith.constant dense<0.000000e+00> : vector<16x128xf32>
    %24 = tpu.matmul %21, %22, %cst_23 {dimension_numbers = #tpu.dot_dimension_numbers<[1], [0], [0], [1], [0, 0, 1, 1], [], []>} : vector<16x128xbf16>, vector<128x128xbf16>, vector<16x128xf32> -> vector<16x128xf32>
    %25 = vector.broadcast %23 : vector<1x128xf32> to vector<16x128xf32>
    %26 = arith.addf %24, %25 : vector<16x128xf32>
    %cst_24 = arith.constant 0.000000e+00 : f32
    %27 = vector.broadcast %cst_24 : f32 to vector<16x128xf32>
    %28 = arith.maximumf %26, %27 : vector<16x128xf32>
    %29 = arith.truncf %28 : vector<16x128xf32> to vector<16x128xbf16>
    %c0_25 = arith.constant 0 : index
    %c0_26 = arith.constant 0 : index
    %30 = vector.load %arg7[%c0_25, %c0_26] : memref<128x128xbf16, #tpu.memory_space<vmem>>, vector<128x128xbf16>
    %c0_27 = arith.constant 0 : index
    %c0_28 = arith.constant 0 : index
    %31 = vector.load %arg8[%c0_27, %c0_28] : memref<1x128xf32, #tpu.memory_space<vmem>>, vector<1x128xf32>
    %cst_29 = arith.constant dense<0.000000e+00> : vector<16x128xf32>
    %32 = tpu.matmul %29, %30, %cst_29 {dimension_numbers = #tpu.dot_dimension_numbers<[1], [0], [0], [1], [0, 0, 1, 1], [], []>} : vector<16x128xbf16>, vector<128x128xbf16>, vector<16x128xf32> -> vector<16x128xf32>
    %33 = vector.broadcast %31 : vector<1x128xf32> to vector<16x128xf32>
    %34 = arith.addf %32, %33 : vector<16x128xf32>
    %35 = vector.extract_strided_slice %34 {offsets = [0, 0], sizes = [16, 4], strides = [1, 1]} : vector<16x128xf32> to vector<16x4xf32>
    %c0_30 = arith.constant 0 : index
    %c0_31 = arith.constant 0 : index
    %36 = vector.load %arg9[%c0_30, %c0_31] : memref<16x4xf32, #tpu.memory_space<vmem>>, vector<16x4xf32>
    tpu.vector_store %arg9[%c0_30, %c0_31], %35 {strides = array<i32>} : memref<16x4xf32, #tpu.memory_space<vmem>>, vector<16x4xf32>,
    return
  }
}

</mosaic_0001>

<llo_original>
// kernel: mlpgrow_forward.1
$region0: #{mlpgrow_forward.1}
  #allocation0 [shape = 'u32[]', space=smem, size = 0x4, offset = 0x4, fixed_abs, tag = 'smem constant byte address 0x4 - core index']
  #allocation1 [shape = 'u32[144,128]{1,0:T(1,128)}', space=vmem, size = 0x12000, scoped, tag = 'internal scratch']
  #allocation2 [shape = 'bf16[16,16]{1,0:T(16,128)(2,1)}', space=vmem, size = 0x1000, scoped, tag = 'scratch operand']
  %s0 = inlined_call_operand.vmem [shape: f32[16,8], index: 0, kind: input, shape index: {}]
  %s1 = inlined_call_operand.vmem [shape: bf16[16,128], index: 1, kind: input, shape index: {}]
  %s2 = inlined_call_operand.vmem [shape: f32[1,128], index: 2, kind: input, shape index: {}]
  %s3 = inlined_call_operand.hbm [shape: bf16[128,128], index: 3, kind: input, shape index: {}]
  %s4 = inlined_call_operand.vmem [shape: f32[1,128], index: 4, kind: input, shape index: {}]
  %s5 = inlined_call_operand.hbm [shape: bf16[128,128], index: 5, kind: input, shape index: {}]
  %s6 = inlined_call_operand.vmem [shape: f32[1,128], index: 6, kind: input, shape index: {}]
  %s7 = inlined_call_operand.hbm [shape: bf16[128,128], index: 7, kind: input, shape index: {}]
  %s8 = inlined_call_operand.vmem [shape: f32[1,128], index: 8, kind: input, shape index: {}]
  %s9 = inlined_call_operand.vmem [shape: f32[16,4], index: 9, kind: output, shape index: {}]
  %s10 = sld [smem:[#allocation0]]
  $region58: #{mlpgrow_forward.1} parent=0
    _
  %s12 = ssub.s32 1, %s10
  %s13 = scalar_select 0, %s12, %s10
  $region1: #{mlpgrow_forward.1} parent=0
    #allocation3 [shape = 'u8[32768]{0}', space=vmem, size = 0x8000, scoped, tag = 'input window, operand 3, single buffered']
    #allocation4 [shape = 's32[1]{0}', space=sflag, size = 0x4, scoped, tag = 'scoped memory for mlpgrow_forward.1']
    #allocation5 [shape = 'u8[32768]{0}', space=vmem, size = 0x8000, scoped, tag = 'input window, operand 5, single buffered']
    #allocation6 [shape = 's32[1]{0}', space=sflag, size = 0x4, scoped, tag = 'scoped memory for mlpgrow_forward.1']
    #allocation7 [shape = 'u8[32768]{0}', space=vmem, size = 0x8000, scoped, tag = 'input window, operand 7, single buffered']
    %14 = vsyncpa [#allocation4], 0
    %15 = vsyncpa [#allocation6], 0
    // Predicated region
    $region2: #{mlpgrow_forward.1} parent=1 // pred_check
      _
    $region3: #{mlpgrow_forward.1} parent=1 // pred_check_branch
      %17 = sbr.rel (0) target = $region5
    $region4: #{mlpgrow_forward.1} parent=1 // pred_region
      _
    $region5: #{mlpgrow_forward.1} parent=1 // pred_fallthru
      _
    // Predicated region
    $region6: #{mlpgrow_forward.1} parent=1 // pred_check
      _
    $region7: #{mlpgrow_forward.1} parent=1 // pred_check_branch
      %19 = sbr.rel (0) target = $region9
    $region8: #{mlpgrow_forward.1} parent=1 // pred_region
      _
    $region9: #{mlpgrow_forward.1} parent=1 // pred_fallthru
      _
    // Predicated region
    $region10: #{mlpgrow_forward.1} parent=1 // pred_check
      _
    $region11: #{mlpgrow_forward.1} parent=1 // pred_check_branch
      %21 = sbr.rel (0) target = $region13
    $region12: #{mlpgrow_forward.1} parent=1 // pred_region
      _
    $region13: #{mlpgrow_forward.1} parent=1 // pred_fallthru
      _
    // Predicated region
    $region14: #{mlpgrow_forward.1} parent=1 // pred_check
      _
    $region15: #{mlpgrow_forward.1} parent=1 // pred_check_branch
      %23 = sbr.rel (0) target = $region17
    $region16: #{mlpgrow_forward.1} parent=1 // pred_region
      %s25 = ssub.s32 1024, 1024
      %26 = vsyncadd [#allocation4], %s25
      %s27 = sshll.u32 [#allocation3], 4
      %s28 = int_to_ptr.vmem [resolvable:$true] %s27
      %33 = dma.hbm_to_vmem [thread:$0]  %s3, 1024, %s28, [#allocation4], 64, 64, 4
    $region17: #{mlpgrow_forward.1} parent=1 // pred_fallthru
      _
    // Predicated region
    $region18: #{mlpgrow_forward.1} parent=1 // pred_check
      _
    $region19: #{mlpgrow_forward.1} parent=1 // pred_check_branch
      %35 = sbr.rel (0) target = $region21
    $region20: #{mlpgrow_forward.1} parent=1 // pred_region
      _
    $region21: #{mlpgrow_forward.1} parent=1 // pred_fallthru
      _
    // Predicated region
    $region22: #{mlpgrow_forward.1} parent=1 // pred_check
      _
    $region23: #{mlpgrow_forward.1} parent=1 // pred_check_branch
      %37 = sbr.rel (0) target = $region25
    $region24: #{mlpgrow_forward.1} parent=1 // pred_region
      %s39 = ssub.s32 1024, 1024
      %40 = vsyncadd [#allocation6], %s39
      %s41 = sshll.u32 [#allocation5], 4
      %s42 = int_to_ptr.vmem [resolvable:$true] %s41
      %47 = dma.hbm_to_vmem [thread:$0]  %s5, 1024, %s42, [#allocation6], 64, 64, 4
    $region25: #{mlpgrow_forward.1} parent=1 // pred_fallthru
      _
    // Predicated region
    $region26: #{mlpgrow_forward.1} parent=1 // pred_check
      _
    $region27: #{mlpgrow_forward.1} parent=1 // pred_check_branch
      %49 = sbr.rel (0) target = $region29
    $region28: #{mlpgrow_forward.1} parent=1 // pred_region
      _
    $region29: #{mlpgrow_forward.1} parent=1 // pred_fallthru
      _
    // Predicated region
    $region30: #{mlpgrow_forward.1} parent=1 // pred_check
      _
    $region31: #{mlpgrow_forward.1} parent=1 // pred_check_branch
      %51 = sbr.rel (0) target = $region33
    $region32: #{mlpgrow_forward.1} parent=1 // pred_region
      %s53 = ssub.s32 1024, 1024
      %54 = vsyncadd [#allocation6], %s53
      %s55 = sshll.u32 [#allocation7], 4
      %s56 = int_to_ptr.vmem [resolvable:$true] %s55
      %61 = dma.hbm_to_vmem [thread:$0]  %s7, 1024, %s56, [#allocation6], 64, 64, 4
    $region33: #{mlpgrow_forward.1} parent=1 // pred_fallthru
      _
    // Predicated region
    $region34: #{mlpgrow_forward.1} parent=1 // pred_check
      _
    $region35: #{mlpgrow_forward.1} parent=1 // pred_check_branch
      %63 = sbr.rel (0) target = $region37
    $region36: #{mlpgrow_forward.1} parent=1 // pred_region
      _
    $region37: #{mlpgrow_forward.1} parent=1 // pred_fallthru
      _
    // Predicated region
    $region38: #{mlpgrow_forward.1} parent=1 // pred_check
      _
    $region39: #{mlpgrow_forward.1} parent=1 // pred_check_branch
      %65 = sbr.rel (0) target = $region41
    $region40: #{mlpgrow_forward.1} parent=1 // pred_region
      %66 = dma.done [#allocation4], 1024
    $region41: #{mlpgrow_forward.1} parent=1 // pred_fallthru
      _
    // Predicated region
    $region42: #{mlpgrow_forward.1} parent=1 // pred_check
      _
    $region43: #{mlpgrow_forward.1} parent=1 // pred_check_branch
      %68 = sbr.rel (0) target = $region45
    $region44: #{mlpgrow_forward.1} parent=1 // pred_region
      %69 = dma.done [#allocation6], 1024
    $region45: #{mlpgrow_forward.1} parent=1 // pred_fallthru
      _
    // Predicated region
    $region46: #{mlpgrow_forward.1} parent=1 // pred_check
      _
    $region47: #{mlpgrow_forward.1} parent=1 // pred_check_branch
      %71 = sbr.rel (0) target = $region49
    $region48: #{mlpgrow_forward.1} parent=1 // pred_region
      %72 = dma.done [#allocation6], 1024
    $region49: #{mlpgrow_forward.1} parent=1 // pred_fallthru
      _
    %vm74 = vcmask 130048
    %75 = vst.msk [vmem:[#allocation2] sm:$0xff] %vm74, 0
    %v76 = vld [vmem:[%s0] sm:$0xff]
    %v77 = vld [vmem:[%s0 + $0x8] sm:$0xff]
    %v78 = vpack.c.bf16 %v77, %v76
    %vm79 = vcmask 64512
    %80 = vst.msk [vmem:[#allocation2] sm:$0xff] %vm79, %v78
    %v81 = vld [vmem:[#allocation2] sm:$0xff]
    %v82 = vld [vmem:[%s1] sm:$0xf]
    %v83 = vld [vmem:[%s1 + $0x4] sm:$0xf]
    %v84 = vld [vmem:[%s2] sm:$0x1]
    %v86 = vlaneseq
    %v87 = vshrl.u32 %v86, 7
    %v88 = vsub.s32 0, %v87
    %v89 = vrot.slane %v84, %v88
    %v93 = vunpack.c.l.b16 %v82
    %v94 = vunpack.c.l.b16 %v83
    %v95 = vpack.c.b16 %v94, %v93
    %v98 = vsel %vm74, %v81, 0
    %100 = vmatprep.subr.bf16.mxu0 0
    %101 = vmatpush1.bf16.msra.mxu0 %v95
    %102 = vmatprep.subr.bf16.mxu0 0
    %103 = vmatpush1.bf16.msra.mxu0 0
    %104 = vmatprep.subr.bf16.mxu0 0
    %105 = vmatpush1.bf16.msra.mxu0 0
    %106 = vmatprep.subr.bf16.mxu0 0
    %107 = vmatpush1.bf16.msra.mxu0 0
    %108 = vmatprep.subr.bf16.mxu0 0
    %109 = vmatpush1.bf16.msra.mxu0 0
    %110 = vmatprep.subr.bf16.mxu0 0
    %111 = vmatpush1.bf16.msra.mxu0 0
    %112 = vmatprep.subr.bf16.mxu0 0
    %113 = vmatpush1.bf16.msra.mxu0 0
    %114 = vmatprep.subr.bf16.mxu0 0
    %115 = vmatpush1.bf16.msra.mxu0 0
    %116 = vmatprep.subr.bf16.mxu0 0
    %117 = vmatpush1.bf16.msra.mxu0 0
    %118 = vmatprep.subr.bf16.mxu0 0
    %119 = vmatpush1.bf16.msra.mxu0 0
    %120 = vmatprep.subr.bf16.mxu0 0
    %121 = vmatpush1.bf16.msra.mxu0 0
    %122 = vmatprep.subr.bf16.mxu0 0
    %123 = vmatpush1.bf16.msra.mxu0 0
    %124 = vmatprep.subr.bf16.mxu0 0
    %125 = vmatpush1.bf16.msra.mxu0 0
    %126 = vmatprep.subr.bf16.mxu0 0
    %127 = vmatpush1.bf16.msra.mxu0 0
    %128 = vmatprep.subr.bf16.mxu0 0
    %129 = vmatpush1.bf16.msra.mxu0 0
    %130 = vmatprep.subr.bf16.mxu0 0
    %131 = vmatpush1.bf16.msra.mxu0 0
    %132 = vmatprep.mubr.bf16.mxu0 0
    %133 = vmatmul.mubr.bf16.gmra.mrb[0].mxu0 %v98
    %v134 = vpop.f32.mrb[0].mxu0
    %v135 = vadd.f32 %v89, %v134
    %v136 = vpop.f32.mrb[0].mxu0
    %v137 = vpop.f32.mrb[0].mxu0
    %v138 = vadd.f32 %v89, %v137
    %v139 = vpop.f32.mrb[0].mxu0
    %140 = vdwg.mxu0
    %v141 = vmax.f32 %v135, 0.0
    %v142 = vmax.f32 %v138, 0.0
    %v143 = vpack.c.bf16 %v142, %v141
    %v144 = vld [vmem:[#allocation3] sm:$0xf]
    %v145 = vld [vmem:[#allocation3 + $0x4] sm:$0xf]
    %v146 = vld [vmem:[#allocation3 + $0x8] sm:$0xf]
    %v147 = vld [vmem:[#allocation3 + $0xc] sm:$0xf]
    %v148 = vld [vmem:[#allocation3 + $0x10] sm:$0xf]
    %v149 = vld [vmem:[#allocation3 + $0x14] sm:$0xf]
    %v150 = vld [vmem:[#allocation3 + $0x18] sm:$0xf]
    %v151 = vld [vmem:[#allocation3 + $0x1c] sm:$0xf]
    %v152 = vld [vmem:[#allocation3 + $0x20] sm:$0xf]
    %v153 = vld [vmem:[#allocation3 + $0x24] sm:$0xf]
    %v154 = vld [vmem:[#allocation3 + $0x28] sm:$0xf]
    %v155 = vld [vmem:[#allocation3 + $0x2c] sm:$0xf]
    %v156 = vld [vmem:[#allocation3 + $0x30] sm:$0xf]
    %v157 = vld [vmem:[#allocation3 + $0x34] sm:$0xf]
    %v158 = vld [vmem:[#allocation3 + $0x38] sm:$0xf]
    %v159 = vld [vmem:[#allocation3 + $0x3c] sm:$0xf]
    %v160 = vld [vmem:[%s4] sm:$0x1]
    %v162 = vlaneseq
    %v163 = vshrl.u32 %v162, 7
    %v164 = vsub.s32 0, %v163
    %v165 = vrot.slane %v160, %v164
    %v183 = vunpack.c.l.b16 %v144
    %v184 = vunpack.c.l.b16 %v145
    %v185 = vunpack.c.l.b16 %v146
    %v186 = vunpack.c.l.b16 %v147
    %v187 = vunpack.c.l.b16 %v148
    %v188 = vunpack.c.l.b16 %v149
    %v189 = vunpack.c.l.b16 %v150
    %v190 = vunpack.c.l.b16 %v151
    %v191 = vunpack.c.l.b16 %v152
    %v192 = vunpack.c.l.b16 %v153
    %v193 = vunpack.c.l.b16 %v154
    %v194 = vunpack.c.l.b16 %v155
    %v195 = vunpack.c.l.b16 %v156
    %v196 = vunpack.c.l.b16 %v157
    %v197 = vunpack.c.l.b16 %v158
    %v198 = vunpack.c.l.b16 %v159
    %v199 = vpack.c.b16 %v184, %v183
    %v200 = vpack.c.b16 %v186, %v185
    %v201 = vpack.c.b16 %v188, %v187
    %v202 = vpack.c.b16 %v190, %v189
    %v203 = vpack.c.b16 %v192, %v191
    %v204 = vpack.c.b16 %v194, %v193
    %v205 = vpack.c.b16 %v196, %v195
    %v206 = vpack.c.b16 %v198, %v197
    %215 = vmatprep.subr.bf16.mxu0 0
    %216 = vmatpush1.bf16.msra.mxu0 %v199
    %217 = vmatprep.subr.bf16.mxu0 0
    %218 = vmatpush1.bf16.msra.mxu0 %v200
    %219 = vmatprep.subr.bf16.mxu0 0
    %220 = vmatpush1.bf16.msra.mxu0 %v201
    %221 = vmatprep.subr.bf16.mxu0 0
    %222 = vmatpush1.bf16.msra.mxu0 %v202
    %223 = vmatprep.subr.bf16.mxu0 0
    %224 = vmatpush1.bf16.msra.mxu0 %v203
    %225 = vmatprep.subr.bf16.mxu0 0
    %226 = vmatpush1.bf16.msra.mxu0 %v204
    %227 = vmatprep.subr.bf16.mxu0 0
    %228 = vmatpush1.bf16.msra.mxu0 %v205
    %229 = vmatprep.subr.bf16.mxu0 0
    %230 = vmatpush1.bf16.msra.mxu0 %v206
    %231 = vmatprep.subr.bf16.mxu0 0
    %232 = vmatpush1.bf16.msra.mxu0 0
    %233 = vmatprep.subr.bf16.mxu0 0
    %234 = vmatpush1.bf16.msra.mxu0 0
    %235 = vmatprep.subr.bf16.mxu0 0
    %236 = vmatpush1.bf16.msra.mxu0 0
    %237 = vmatprep.subr.bf16.mxu0 0
    %238 = vmatpush1.bf16.msra.mxu0 0
    %239 = vmatprep.subr.bf16.mxu0 0
    %240 = vmatpush1.bf16.msra.mxu0 0
    %241 = vmatprep.subr.bf16.mxu0 0
    %242 = vmatpush1.bf16.msra.mxu0 0
    %243 = vmatprep.subr.bf16.mxu0 0
    %244 = vmatpush1.bf16.msra.mxu0 0
    %245 = vmatprep.subr.bf16.mxu0 0
    %246 = vmatpush1.bf16.msra.mxu0 0
    %247 = vmatprep.mubr.bf16.mxu0 0
    %248 = vmatmul.mubr.bf16.gmra.mrb[0].mxu0 %v143
    %v249 = vpop.f32.mrb[0].mxu0
    %v250 = vadd.f32 %v165, %v249
    %v251 = vpop.f32.mrb[0].mxu0
    %v252 = vpop.f32.mrb[0].mxu0
    %v253 = vadd.f32 %v165, %v252
    %v254 = vpop.f32.mrb[0].mxu0
    %255 = vdwg.mxu0
    %v256 = vmax.f32 %v250, 0.0
    %v257 = vmax.f32 %v253, 0.0
    %v258 = vpack.c.bf16 %v257, %v256
    %v259 = vld [vmem:[#allocation5] sm:$0xf]
    %v260 = vld [vmem:[#allocation5 + $0x4] sm:$0xf]
    %v261 = vld [vmem:[#allocation5 + $0x8] sm:$0xf]
    %v262 = vld [vmem:[#allocation5 + $0xc] sm:$0xf]
    %v263 = vld [vmem:[#allocation5 + $0x10] sm:$0xf]
    %v264 = vld [vmem:[#allocation5 + $0x14] sm:$0xf]
    %v265 = vld [vmem:[#allocation5 + $0x18] sm:$0xf]
    %v266 = vld [vmem:[#allocation5 + $0x1c] sm:$0xf]
    %v267 = vld [vmem:[#allocation5 + $0x20] sm:$0xf]
    %v268 = vld [vmem:[#allocation5 + $0x24] sm:$0xf]
    %v269 = vld [vmem:[#allocation5 + $0x28] sm:$0xf]
    %v270 = vld [vmem:[#allocation5 + $0x2c] sm:$0xf]
    %v271 = vld [vmem:[#allocation5 + $0x30] sm:$0xf]
    %v272 = vld [vmem:[#allocation5 + $0x34] sm:$0xf]
    %v273 = vld [vmem:[#allocation5 + $0x38] sm:$0xf]
    %v274 = vld [vmem:[#allocation5 + $0x3c] sm:$0xf]
    %v275 = vld [vmem:[%s6] sm:$0x1]
    %v277 = vlaneseq
    %v278 = vshrl.u32 %v277, 7
    %v279 = vsub.s32 0, %v278
    %v280 = vrot.slane %v275, %v279
    %v298 = vunpack.c.l.b16 %v259
    %v299 = vunpack.c.l.b16 %v260
    %v300 = vunpack.c.l.b16 %v261
    %v301 = vunpack.c.l.b16 %v262
    %v302 = vunpack.c.l.b16 %v263
    %v303 = vunpack.c.l.b16 %v264
    %v304 = vunpack.c.l.b16 %v265
    %v305 = vunpack.c.l.b16 %v266
    %v306 = vunpack.c.l.b16 %v267
    %v307 = vunpack.c.l.b16 %v268
    %v308 = vunpack.c.l.b16 %v269
    %v309 = vunpack.c.l.b16 %v270
    %v310 = vunpack.c.l.b16 %v271
    %v311 = vunpack.c.l.b16 %v272
    %v312 = vunpack.c.l.b16 %v273
    %v313 = vunpack.c.l.b16 %v274
    %v314 = vpack.c.b16 %v299, %v298
    %v315 = vpack.c.b16 %v301, %v300
    %v316 = vpack.c.b16 %v303, %v302
    %v317 = vpack.c.b16 %v305, %v304
    %v318 = vpack.c.b16 %v307, %v306
    %v319 = vpack.c.b16 %v309, %v308
    %v320 = vpack.c.b16 %v311, %v310
    %v321 = vpack.c.b16 %v313, %v312
    %330 = vmatprep.subr.bf16.mxu0 0
    %331 = vmatpush1.bf16.msra.mxu0 %v314
    %332 = vmatprep.subr.bf16.mxu0 0
    %333 = vmatpush1.bf16.msra.mxu0 %v315
    %334 = vmatprep.subr.bf16.mxu0 0
    %335 = vmatpush1.bf16.msra.mxu0 %v316
    %336 = vmatprep.subr.bf16.mxu0 0
    %337 = vmatpush1.bf16.msra.mxu0 %v317
    %338 = vmatprep.subr.bf16.mxu0 0
    %339 = vmatpush1.bf16.msra.mxu0 %v318
    %340 = vmatprep.subr.bf16.mxu0 0
    %341 = vmatpush1.bf16.msra.mxu0 %v319
    %342 = vmatprep.subr.bf16.mxu0 0
    %343 = vmatpush1.bf16.msra.mxu0 %v320
    %344 = vmatprep.subr.bf16.mxu0 0
    %345 = vmatpush1.bf16.msra.mxu0 %v321
    %346 = vmatprep.subr.bf16.mxu0 0
    %347 = vmatpush1.bf16.msra.mxu0 0
    %348 = vmatprep.subr.bf16.mxu0 0
    %349 = vmatpush1.bf16.msra.mxu0 0
    %350 = vmatprep.subr.bf16.mxu0 0
    %351 = vmatpush1.bf16.msra.mxu0 0
    %352 = vmatprep.subr.bf16.mxu0 0
    %353 = vmatpush1.bf16.msra.mxu0 0
    %354 = vmatprep.subr.bf16.mxu0 0
    %355 = vmatpush1.bf16.msra.mxu0 0
    %356 = vmatprep.subr.bf16.mxu0 0
    %357 = vmatpush1.bf16.msra.mxu0 0
    %358 = vmatprep.subr.bf16.mxu0 0
    %359 = vmatpush1.bf16.msra.mxu0 0
    %360 = vmatprep.subr.bf16.mxu0 0
    %361 = vmatpush1.bf16.msra.mxu0 0
    %362 = vmatprep.mubr.bf16.mxu0 0
    %363 = vmatmul.mubr.bf16.gmra.mrb[0].mxu0 %v258
    %v364 = vpop.f32.mrb[0].mxu0
    %v365 = vadd.f32 %v280, %v364
    %v366 = vpop.f32.mrb[0].mxu0
    %v367 = vpop.f32.mrb[0].mxu0
    %v368 = vadd.f32 %v280, %v367
    %v369 = vpop.f32.mrb[0].mxu0
    %370 = vdwg.mxu0
    %v371 = vmax.f32 %v365, 0.0
    %v372 = vmax.f32 %v368, 0.0
    %v373 = vpack.c.bf16 %v372, %v371
    %v374 = vld [vmem:[#allocation7] sm:$0xf]
    %v375 = vld [vmem:[#allocation7 + $0x4] sm:$0xf]
    %v376 = vld [vmem:[#allocation7 + $0x8] sm:$0xf]
    %v377 = vld [vmem:[#allocation7 + $0xc] sm:$0xf]
    %v378 = vld [vmem:[#allocation7 + $0x10] sm:$0xf]
    %v379 = vld [vmem:[#allocation7 + $0x14] sm:$0xf]
    %v380 = vld [vmem:[#allocation7 + $0x18] sm:$0xf]
    %v381 = vld [vmem:[#allocation7 + $0x1c] sm:$0xf]
    %v382 = vld [vmem:[#allocation7 + $0x20] sm:$0xf]
    %v383 = vld [vmem:[#allocation7 + $0x24] sm:$0xf]
    %v384 = vld [vmem:[#allocation7 + $0x28] sm:$0xf]
    %v385 = vld [vmem:[#allocation7 + $0x2c] sm:$0xf]
    %v386 = vld [vmem:[#allocation7 + $0x30] sm:$0xf]
    %v387 = vld [vmem:[#allocation7 + $0x34] sm:$0xf]
    %v388 = vld [vmem:[#allocation7 + $0x38] sm:$0xf]
    %v389 = vld [vmem:[#allocation7 + $0x3c] sm:$0xf]
    %v390 = vld [vmem:[%s8] sm:$0x1]
    %v392 = vlaneseq
    %v393 = vshrl.u32 %v392, 7
    %v394 = vsub.s32 0, %v393
    %v395 = vrot.slane %v390, %v394
    %v413 = vunpack.c.l.b16 %v374
    %v414 = vunpack.c.l.b16 %v375
    %v415 = vunpack.c.l.b16 %v376
    %v416 = vunpack.c.l.b16 %v377
    %v417 = vunpack.c.l.b16 %v378
    %v418 = vunpack.c.l.b16 %v379
    %v419 = vunpack.c.l.b16 %v380
    %v420 = vunpack.c.l.b16 %v381
    %v421 = vunpack.c.l.b16 %v382
    %v422 = vunpack.c.l.b16 %v383
    %v423 = vunpack.c.l.b16 %v384
    %v424 = vunpack.c.l.b16 %v385
    %v425 = vunpack.c.l.b16 %v386
    %v426 = vunpack.c.l.b16 %v387
    %v427 = vunpack.c.l.b16 %v388
    %v428 = vunpack.c.l.b16 %v389
    %v429 = vpack.c.b16 %v414, %v413
    %v430 = vpack.c.b16 %v416, %v415
    %v431 = vpack.c.b16 %v418, %v417
    %v432 = vpack.c.b16 %v420, %v419
    %v433 = vpack.c.b16 %v422, %v421
    %v434 = vpack.c.b16 %v424, %v423
    %v435 = vpack.c.b16 %v426, %v425
    %v436 = vpack.c.b16 %v428, %v427
    %445 = vmatprep.subr.bf16.mxu0 0
    %446 = vmatpush1.bf16.msra.mxu0 %v429
    %447 = vmatprep.subr.bf16.mxu0 0
    %448 = vmatpush1.bf16.msra.mxu0 %v430
    %449 = vmatprep.subr.bf16.mxu0 0
    %450 = vmatpush1.bf16.msra.mxu0 %v431
    %451 = vmatprep.subr.bf16.mxu0 0
    %452 = vmatpush1.bf16.msra.mxu0 %v432
    %453 = vmatprep.subr.bf16.mxu0 0
    %454 = vmatpush1.bf16.msra.mxu0 %v433
    %455 = vmatprep.subr.bf16.mxu0 0
    %456 = vmatpush1.bf16.msra.mxu0 %v434
    %457 = vmatprep.subr.bf16.mxu0 0
    %458 = vmatpush1.bf16.msra.mxu0 %v435
    %459 = vmatprep.subr.bf16.mxu0 0
    %460 = vmatpush1.bf16.msra.mxu0 %v436
    %461 = vmatprep.subr.bf16.mxu0 0
    %462 = vmatpush1.bf16.msra.mxu0 0
    %463 = vmatprep.subr.bf16.mxu0 0
    %464 = vmatpush1.bf16.msra.mxu0 0
    %465 = vmatprep.subr.bf16.mxu0 0
    %466 = vmatpush1.bf16.msra.mxu0 0
    %467 = vmatprep.subr.bf16.mxu0 0
    %468 = vmatpush1.bf16.msra.mxu0 0
    %469 = vmatprep.subr.bf16.mxu0 0
    %470 = vmatpush1.bf16.msra.mxu0 0
    %471 = vmatprep.subr.bf16.mxu0 0
    %472 = vmatpush1.bf16.msra.mxu0 0
    %473 = vmatprep.subr.bf16.mxu0 0
    %474 = vmatpush1.bf16.msra.mxu0 0
    %475 = vmatprep.subr.bf16.mxu0 0
    %476 = vmatpush1.bf16.msra.mxu0 0
    %477 = vmatprep.mubr.bf16.mxu0 0
    %478 = vmatmul.mubr.bf16.gmra.mrb[0].mxu0 %v373
    %v479 = vpop.f32.mrb[0].mxu0
    %v480 = vadd.f32 %v395, %v479
    %v481 = vpop.f32.mrb[0].mxu0
    %v482 = vpop.f32.mrb[0].mxu0
    %v483 = vadd.f32 %v395, %v482
    %v484 = vpop.f32.mrb[0].mxu0
    %485 = vdwg.mxu0
    %vm486 = vcmask 31744
    %487 = vst.msk [vmem:[%s9] sm:$0xff] %vm486, %v480
    %488 = vst.msk [vmem:[%s9 + $0x8] sm:$0xff] %vm486, %v483
    // Predicated region
    $region50: #{mlpgrow_forward.1} parent=1 // pred_check
      _
    $region51: #{mlpgrow_forward.1} parent=1 // pred_check_branch
      %490 = sbr.rel (0) target = $region53
    $region52: #{mlpgrow_forward.1} parent=1 // pred_region
      _
    $region53: #{mlpgrow_forward.1} parent=1 // pred_fallthru
      _
    // Predicated region
    $region54: #{mlpgrow_forward.1} parent=1 // pred_check
      _
    $region55: #{mlpgrow_forward.1} parent=1 // pred_check_branch
      %492 = sbr.rel (0) target = $region57
    $region56: #{mlpgrow_forward.1} parent=1 // pred_region
      _
    $region57: #{mlpgrow_forward.1} parent=1 // pred_fallthru
      _
    %493 = vsyncpa [#allocation4], 1
    %494 = vsyncpa [#allocation6], 1

</llo_original>
